<compile_context>
chip_gen: v7x
topology: tpu7x:2x2x1
jax: 0.10.0
libtpu: 0.0.40
codegen_flags: <defaults>
</compile_context>

<pallas_src>
import functools

import jax
import jax.numpy as jnp
from jax import lax
from jax.experimental import pallas as pl
from jax.experimental.pallas import tpu as pltpu

# Model dims (from the PyTorch module)
D_IN, D_H1, D_H2, D_OUT = 11, 96, 64, 1


def _mlp_kernel(x_ref, w1_ref, b1_ref, w2_ref, b2_ref, w3_ref, b3_ref, o_ref):
    """Fused 3-layer MLP.

    x_ref : (block_b, 11)  natural (batch, feature) layout, no HBM transpose
    w1    : (96, 11)   b1: (96, 1)
    w2    : (64, 96)   b2: (64, 1)
    w3    : (64, 1)    b3: (1, 1)    (output layer kept off the MXU)
    o_ref : (1, block_b)  lane-dense output slab
    """
    x = x_ref[...]                                                     # (bb, 11)

    # Layer 1: contract the feature axis of BOTH operands ->
    # (96, 11) x (bb, 11) -> (96, bb): batch lands on the lane axis with no
    # wrapper-side or in-kernel transpose.  f32 accumulation on the MXU.
    h1 = lax.dot_general(w1_ref[...], x, (((1,), (1,)), ((), ())),
                         preferred_element_type=jnp.float32)
    h1 = jnp.maximum(h1 + b1_ref[...], 0.0)                            # f32 ReLU
    h1 = h1.astype(w2_ref.dtype)                                       # single bf16 copy

    # Layer 2: (64, 96) @ (96, bb) -> (64, bb), f32 accumulation.
    h2 = jnp.dot(w2_ref[...], h1, preferred_element_type=jnp.float32)
    h2 = jnp.maximum(h2 + b2_ref[...], 0.0)                            # f32 (64, bb)

    # Output layer on VPU/XLU (idle slots): (64, bb) * (64, 1) -> sublane
    # reduce -> (1, bb).  The MXU would run at <0.1% utilization here.
    out = jnp.sum(h2 * w3_ref[...], axis=0, keepdims=True)
    o_ref[...] = (out + b3_ref[...]).astype(o_ref.dtype)               # (1, bb)


def _pick_block_b(batch):
    """>=2 grid steps (v7x dual TensorCore), multiple of 128, capped at 4096."""
    target = pl.cdiv(batch, 2)
    return int(min(4096, max(128, ((target + 127) // 128) * 128)))


@functools.partial(jax.jit, static_argnames=("block_b", "use_bf16"))
def mlp_forward(x, params, *, block_b=None, use_bf16=True):
    """x: (B, 11) float32, same layout as the PyTorch module input.

    Returns (B, 1) float32.
    """
    B = x.shape[0]
    if block_b is None:
        block_b = _pick_block_b(B)
    assert block_b % 128 == 0, "block_b must be a multiple of 128 (lane width)"
    num_blocks = pl.cdiv(B, block_b)
    B_pad = num_blocks * block_b

    # Cheap row-pad only (no transpose, no extra full read+write of x in HBM).
    # Padded rows compute garbage and are sliced off below.
    x_p = jnp.pad(x, ((0, B_pad - B), (0, 0)))

    w1, b1 = params["w1"], params["b1"]              # (96, 11), (96, 1)
    w2, b2 = params["w2"], params["b2"]              # (64, 96), (64, 1)
    w3, b3 = params["w3"], params["b3"]              # (1, 64),  (1, 1)
    w3_col = w3.reshape(D_H2, 1)                     # (64, 1) for lane broadcast

    if use_bf16:
        # bf16 MXU operands, f32 accumulation.  Biases / w3 stay f32 (VPU path).
        x_p = x_p.astype(jnp.bfloat16)
        w1 = w1.astype(jnp.bfloat16)
        w2 = w2.astype(jnp.bfloat16)

    weight_bytes = sum(int(a.size) * a.dtype.itemsize
                       for a in (w1, b1, w2, b2, w3_col, b3))
    cost = pl.CostEstimate(
        flops=2 * B_pad * (D_IN * D_H1 + D_H1 * D_H2 + D_H2 * D_OUT),
        transcendentals=0,
        bytes_accessed=int(x_p.size) * x_p.dtype.itemsize
        + weight_bytes
        + B_pad * D_OUT * 4,
    )

    # Weights / biases use full-array blocks (always legal); only the batch
    # axis of x (sublane) and of the output (lane) is tiled.
    full = lambda a: pl.BlockSpec(a.shape, lambda i: (0, 0))

    out_t = pl.pallas_call(
        _mlp_kernel,
        out_shape=jax.ShapeDtypeStruct((D_OUT, B_pad), jnp.float32),
        grid_spec=pl.GridSpec(
            grid=(num_blocks,),
            in_specs=[
                pl.BlockSpec((block_b, D_IN), lambda i: (i, 0)),   # x tile
                full(w1), full(b1),
                full(w2), full(b2),
                full(w3_col), full(b3),
            ],
            out_specs=pl.BlockSpec((D_OUT, block_b), lambda i: (0, i)),
        ),
        compiler_params=pltpu.CompilerParams(
            dimension_semantics=("parallel",),   # batch axis shards across TCs (v7x)
        ),
        cost_estimate=cost,
    )(x_p, w1, b1, w2, b2, w3_col, b3)

    return out_t[:, :B].T                                              # (B, 1)


def init_params(key):
    """Deterministic init matching the PyTorch module's parameter shapes.

    nn.Linear(in, out) holds weight (out, in) and bias (out,); we keep the
    native (out, in) weight and a (out, 1) bias for lane broadcast.
    """
    def linear(k, fan_in, fan_out):
        kw, kb = jax.random.split(k)
        bound = 1.0 / jnp.sqrt(fan_in)
        w = jax.random.uniform(kw, (fan_out, fan_in), jnp.float32, -bound, bound)
        b = jax.random.uniform(kb, (fan_out, 1), jnp.float32, -bound, bound)
        return w, b

    k1, k2, k3 = jax.random.split(key, 3)
    w1, b1 = linear(k1, D_IN, D_H1)
    w2, b2 = linear(k2, D_H1, D_H2)
    w3, b3 = linear(k3, D_H2, D_OUT)
    return {"w1": w1, "b1": b1, "w2": w2, "b2": b2, "w3": w3, "b3": b3}


def mlp_reference(x, p):
    h1 = jnp.maximum(x @ p["w1"].T + p["b1"].T, 0.0)
    h2 = jnp.maximum(h1 @ p["w2"].T + p["b2"].T, 0.0)
    return h2 @ p["w3"].T + p["b3"].T


if __name__ == "__main__":
    key = jax.random.PRNGKey(0)
    k_params, k_x = jax.random.split(key)

    params = init_params(k_params)
    # Small, deliberately ragged batch (not a multiple of 128) to exercise the
    # cdiv-grid + padding path; auto block_b picks 128 -> 2 grid steps.
    B = 200
    x = jax.random.normal(k_x, (B, D_IN), jnp.float32)

    ref = mlp_reference(x, params)

    # Default bf16-MXU path: loose tolerance (bf16 operands, f32 accumulation).
    out = jax.block_until_ready(mlp_forward(x, params))
    assert out.shape == (B, D_OUT)
    assert jnp.allclose(out, ref, atol=1e-1, rtol=1e-1), "bf16 mismatch vs reference"

    # f32 path (correctness check only; slower on the bf16-native MXU).
    out_f32 = jax.block_until_ready(mlp_forward(x, params, use_bf16=False))
    assert out_f32.shape == (B, D_OUT)
    assert jnp.allclose(out_f32, ref, atol=1e-4, rtol=1e-4), "f32 mismatch vs reference"

    print("KERNEL_OK")
</pallas_src>

<mosaic_0001>
module attributes {stable_mosaic.version = 11 : i64} {
  func.func @_mlp_kernel(%arg0: i32, %arg1: memref<128x11xbf16, #tpu.memory_space<vmem>>, %arg2: memref<96x11xbf16, #tpu.memory_space<vmem>>, %arg3: memref<96x1xf32, #tpu.memory_space<vmem>>, %arg4: memref<64x96xbf16, #tpu.memory_space<vmem>>, %arg5: memref<64x1xf32, #tpu.memory_space<vmem>>, %arg6: memref<64x1xf32, #tpu.memory_space<vmem>>, %arg7: memref<1x1xf32, #tpu.memory_space<vmem>>, %arg8: memref<1x128xf32, #tpu.memory_space<vmem>>) attributes {dimension_semantics = [#tpu.dimension_semantics<parallel>], iteration_bounds = array<i64: 2>, scalar_prefetch = 0 : i64, scratch_operands = 0 : i64, tpu.core_type = #tpu.core_type<tc>, window_params = [{transform_indices = @transform_0, window_bounds = array<i64: 128, 11>}, {pipeline_mode = #tpu.pipeline_mode<synchronous>, transform_indices = @transform_1, window_bounds = array<i64: 96, 11>}, {pipeline_mode = #tpu.pipeline_mode<synchronous>, transform_indices = @transform_2, window_bounds = array<i64: 96, 1>}, {pipeline_mode = #tpu.pipeline_mode<synchronous>, transform_indices = @transform_3, window_bounds = array<i64: 64, 96>}, {pipeline_mode = #tpu.pipeline_mode<synchronous>, transform_indices = @transform_4, window_bounds = array<i64: 64, 1>}, {pipeline_mode = #tpu.pipeline_mode<synchronous>, transform_indices = @transform_5, window_bounds = array<i64: 64, 1>}, {pipeline_mode = #tpu.pipeline_mode<synchronous>, transform_indices = @transform_6, window_bounds = array<i64: 1, 1>}, {transform_indices = @transform_7, window_bounds = array<i64: 1, 128>}]} {
    %c0 = arith.constant 0 : index
    %c0_0 = arith.constant 0 : index
    %0 = vector.load %arg1[%c0, %c0_0] : memref<128x11xbf16, #tpu.memory_space<vmem>>, vector<128x11xbf16>
    %c0_1 = arith.constant 0 : index
    %c0_2 = arith.constant 0 : index
    %1 = vector.load %arg2[%c0_1, %c0_2] : memref<96x11xbf16, #tpu.memory_space<vmem>>, vector<96x11xbf16>
    %cst = arith.constant dense<0.000000e+00> : vector<96x128xf32>
    %2 = tpu.matmul %1, %0, %cst {dimension_numbers = #tpu.dot_dimension_numbers<[1], [1], [0], [0], [0, 0, 1, 0], [], []>} : vector<96x11xbf16>, vector<128x11xbf16>, vector<96x128xf32> -> vector<96x128xf32>
    %c0_3 = arith.constant 0 : index
    %c0_4 = arith.constant 0 : index
    %3 = vector.load %arg3[%c0_3, %c0_4] : memref<96x1xf32, #tpu.memory_space<vmem>>, vector<96x1xf32>
    %4 = vector.broadcast %3 : vector<96x1xf32> to vector<96x128xf32>
    %5 = arith.addf %2, %4 : vector<96x128xf32>
    %cst_5 = arith.constant 0.000000e+00 : f32
    %6 = vector.broadcast %cst_5 : f32 to vector<96x128xf32>
    %7 = arith.maximumf %5, %6 : vector<96x128xf32>
    %8 = arith.truncf %7 : vector<96x128xf32> to vector<96x128xbf16>
    %c0_6 = arith.constant 0 : index
    %c0_7 = arith.constant 0 : index
    %9 = vector.load %arg4[%c0_6, %c0_7] : memref<64x96xbf16, #tpu.memory_space<vmem>>, vector<64x96xbf16>
    %cst_8 = arith.constant dense<0.000000e+00> : vector<64x128xf32>
    %10 = tpu.matmul %9, %8, %cst_8 {dimension_numbers = #tpu.dot_dimension_numbers<[1], [0], [0], [1], [0, 0, 1, 1], [], []>} : vector<64x96xbf16>, vector<96x128xbf16>, vector<64x128xf32> -> vector<64x128xf32>
    %c0_9 = arith.constant 0 : index
    %c0_10 = arith.constant 0 : index
    %11 = vector.load %arg5[%c0_9, %c0_10] : memref<64x1xf32, #tpu.memory_space<vmem>>, vector<64x1xf32>
    %12 = vector.broadcast %11 : vector<64x1xf32> to vector<64x128xf32>
    %13 = arith.addf %10, %12 : vector<64x128xf32>
    %cst_11 = arith.constant 0.000000e+00 : f32
    %14 = vector.broadcast %cst_11 : f32 to vector<64x128xf32>
    %15 = arith.maximumf %13, %14 : vector<64x128xf32>
    %c0_12 = arith.constant 0 : index
    %c0_13 = arith.constant 0 : index
    %16 = vector.load %arg6[%c0_12, %c0_13] : memref<64x1xf32, #tpu.memory_space<vmem>>, vector<64x1xf32>
    %17 = vector.broadcast %16 : vector<64x1xf32> to vector<64x128xf32>
    %18 = arith.mulf %15, %17 : vector<64x128xf32>
    %cst_14 = arith.constant dense<0.000000e+00> : vector<128xf32>
    %19 = vector.multi_reduction <add>, %18, %cst_14 [0] : vector<64x128xf32> to vector<128xf32>
    %20 = vector.shape_cast %19 : vector<128xf32> to vector<1x128xf32>
    %c0_15 = arith.constant 0 : index
    %c0_16 = arith.constant 0 : index
    %21 = vector.load %arg7[%c0_15, %c0_16] : memref<1x1xf32, #tpu.memory_space<vmem>>, vector<1x1xf32>
    %22 = vector.broadcast %21 : vector<1x1xf32> to vector<1x128xf32>
    %23 = arith.addf %20, %22 : vector<1x128xf32>
    %c0_17 = arith.constant 0 : index
    %c0_18 = arith.constant 0 : index
    %24 = vector.load %arg8[%c0_17, %c0_18] : memref<1x128xf32, #tpu.memory_space<vmem>>, vector<1x128xf32>
    tpu.vector_store %arg8[%c0_17, %c0_18], %23 {strides = array<i32>} : memref<1x128xf32, #tpu.memory_space<vmem>>, vector<1x128xf32>,
    return
  }
  func.func @transform_0(%arg0: i32) -> (i32, i32) {
    %c0_i32 = arith.constant 0 : i32
    %c0_i32_0 = arith.constant 0 : i32
    return %arg0, %c0_i32 : i32, i32
  }
  func.func @transform_1(%arg0: i32) -> (i32, i32) {
    %c0_i32 = arith.constant 0 : i32
    %c0_i32_0 = arith.constant 0 : i32
    %c0_i32_1 = arith.constant 0 : i32
    return %c0_i32, %c0_i32_0 : i32, i32
  }
  func.func @transform_2(%arg0: i32) -> (i32, i32) {
    %c0_i32 = arith.constant 0 : i32
    %c0_i32_0 = arith.constant 0 : i32
    %c0_i32_1 = arith.constant 0 : i32
    return %c0_i32, %c0_i32_0 : i32, i32
  }
  func.func @transform_3(%arg0: i32) -> (i32, i32) {
    %c0_i32 = arith.constant 0 : i32
    %c0_i32_0 = arith.constant 0 : i32
    %c0_i32_1 = arith.constant 0 : i32
    return %c0_i32, %c0_i32_0 : i32, i32
  }
  func.func @transform_4(%arg0: i32) -> (i32, i32) {
    %c0_i32 = arith.constant 0 : i32
    %c0_i32_0 = arith.constant 0 : i32
    %c0_i32_1 = arith.constant 0 : i32
    return %c0_i32, %c0_i32_0 : i32, i32
  }
  func.func @transform_5(%arg0: i32) -> (i32, i32) {
    %c0_i32 = arith.constant 0 : i32
    %c0_i32_0 = arith.constant 0 : i32
    %c0_i32_1 = arith.constant 0 : i32
    return %c0_i32, %c0_i32_0 : i32, i32
  }
  func.func @transform_6(%arg0: i32) -> (i32, i32) {
    %c0_i32 = arith.constant 0 : i32
    %c0_i32_0 = arith.constant 0 : i32
    %c0_i32_1 = arith.constant 0 : i32
    return %c0_i32, %c0_i32_0 : i32, i32
  }
  func.func @transform_7(%arg0: i32) -> (i32, i32) {
    %c0_i32 = arith.constant 0 : i32
    %c0_i32_0 = arith.constant 0 : i32
    return %c0_i32, %arg0 : i32, i32
  }
}

</mosaic_0001>

<llo_original>
// kernel: mlp_forward.1
$region0: #{mlp_forward.1}
  #allocation0 [shape = 'u32[]', space=smem, size = 0x4, offset = 0x4, fixed_abs, tag = 'smem constant byte address 0x4 - core index']
  #allocation1 [shape = 'u32[144,128]{1,0:T(1,128)}', space=vmem, size = 0x12000, scoped, tag = 'internal scratch']
  #allocation2 [shape = 'f32[1,1]{1,0:T(1,128)S(1)}', space=vmem, size = 0x200, scoped, tag = 'scoped memory for mlp_forward.1']
  %s0 = inlined_call_operand.vmem [shape: bf16[256,11], index: 0, kind: input, shape index: {}]
  %s1 = inlined_call_operand.vmem [shape: bf16[96,11], index: 1, kind: input, shape index: {}]
  %s2 = inlined_call_operand.vmem [shape: f32[96,1], index: 2, kind: input, shape index: {}]
  %s3 = inlined_call_operand.vmem [shape: bf16[64,96], index: 3, kind: input, shape index: {}]
  %s4 = inlined_call_operand.vmem [shape: f32[64,1], index: 4, kind: input, shape index: {}]
  %s5 = inlined_call_operand.vmem [shape: f32[64,1], index: 5, kind: input, shape index: {}]
  %s6 = inlined_call_operand.<no memory space> [shape: f32[1,1], index: 6, kind: input, shape index: {}]
  %s7 = inlined_call_operand.vmem [shape: f32[1,256], index: 7, kind: output, shape index: {}]
  %s8 = sld [smem:[#allocation0]]
  $region61: #{mlp_forward.1} parent=0
    _
  %s10 = ssub.s32 1, %s8
  %s11 = scalar_select 0, %s10, %s8
  %v12 = vstv %s6
  %13 = vst [vmem:[#allocation2] sm:$0x1] %v12
  loop: start=0, step=1, limit=4
  $region2: #{mlp_forward.1} parent=0 // loop_pre_header
    _
  $region3: #{mlp_forward.1} parent=0 // loop_header
    %s15 = sphi 0, %s19
    %p16 = scmp.ge.s32.totalorder %s15, 4
    %s25 = sphi 0, %s27
    %s28 = sphi 0, %s25
    %s29 = sphi 0, %s28
    %s45 = sphi 0, %s29
    %s49 = sphi 0, %s49
    %s51 = sphi 0, %s49
    %s52 = sphi 0, %s51
    %s66 = sphi 0, %s52
    %s70 = sphi 0, %s70
    %s72 = sphi 0, %s70
    %s73 = sphi 0, %s72
    %s87 = sphi 0, %s73
    %s91 = sphi 0, %s91
    %s93 = sphi 0, %s91
    %s94 = sphi 0, %s93
    %s108 = sphi 0, %s94
    %s112 = sphi 0, %s112
    %s114 = sphi 0, %s112
    %s115 = sphi 0, %s114
    %s129 = sphi 0, %s115
    %s133 = sphi 0, %s133
    %s135 = sphi 0, %s133
    %s136 = sphi 0, %s135
    %s150 = sphi 0, %s136
    %s154 = sphi 0, %s154
    %s156 = sphi 0, %s154
    %s157 = sphi 0, %s156
    %s171 = sphi 0, %s157
    %s177 = sphi 0, %s179
    %s180 = sphi 0, %s177
    %s181 = sphi 0, %s180
    %s197 = sphi 0, %s181
  $region4: #{mlp_forward.1} parent=0 // loop_header_branch
    %18 = sbr.rel (%p16) target = $region8
  $region5: #{mlp_forward.1} parent=0 // loop_body
    %s20 = ssub.s32 %s15, 1
    %s21 = ssub.s32 %s15, 2
    %s22 = sadd.s32 %s15, 1
    %s23 = ssub.s32 %s15, %s22
    %p24 = scmp.eq.s32.totalorder %s23, 0
    %s26 = sadd.s32 %s25, 1
    %s27 = scalar_select %p24, %s25, %s26
    %p30 = pneg %p24
    %p31 = scmp.eq.s32.totalorder %s15, 1
    %p32 = por %p30, %p31
    %p33 = scmp.ne.s32.totalorder %s25, %s28
    %p34 = scmp.eq.s32.totalorder %s15, 0
    %p35 = por %p33, %p34
    %p36 = scmp.ne.s32.totalorder %s25, %s28
    %p37 = scmp.eq.s32.totalorder %s20, 1
    %p38 = por %p36, %p37
    %p39 = scmp.ne.s32.totalorder %s28, %s29
    %p40 = scmp.eq.s32.totalorder %s20, 0
    %p41 = por %p39, %p40
    %p42 = scmp.ne.s32.totalorder %s28, %s29
    %p43 = scmp.eq.s32.totalorder %s21, 1
    %p44 = por %p42, %p43
    %p46 = scmp.ne.s32.totalorder %s29, %s45
    %p47 = scmp.eq.s32.totalorder %s21, 0
    %p48 = por %p46, %p47
    %s50 = sadd.s32 %s49, 1
    %p53 = scmp.eq.s32.totalorder %s15, 1
    %p54 = scmp.ne.s32.totalorder %s49, %s51
    %p55 = scmp.eq.s32.totalorder %s15, 0
    %p56 = por %p54, %p55
    %p57 = scmp.ne.s32.totalorder %s49, %s51
    %p58 = scmp.eq.s32.totalorder %s20, 1
    %p59 = por %p57, %p58
    %p60 = scmp.ne.s32.totalorder %s51, %s52
    %p61 = scmp.eq.s32.totalorder %s20, 0
    %p62 = por %p60, %p61
    %p63 = scmp.ne.s32.totalorder %s51, %s52
    %p64 = scmp.eq.s32.totalorder %s21, 1
    %p65 = por %p63, %p64
    %p67 = scmp.ne.s32.totalorder %s52, %s66
    %p68 = scmp.eq.s32.totalorder %s21, 0
    %p69 = por %p67, %p68
    %s71 = sadd.s32 %s70, 1
    %p74 = scmp.eq.s32.totalorder %s15, 1
    %p75 = scmp.ne.s32.totalorder %s70, %s72
    %p76 = scmp.eq.s32.totalorder %s15, 0
    %p77 = por %p75, %p76
    %p78 = scmp.ne.s32.totalorder %s70, %s72
    %p79 = scmp.eq.s32.totalorder %s20, 1
    %p80 = por %p78, %p79
    %p81 = scmp.ne.s32.totalorder %s72, %s73
    %p82 = scmp.eq.s32.totalorder %s20, 0
    %p83 = por %p81, %p82
    %p84 = scmp.ne.s32.totalorder %s72, %s73
    %p85 = scmp.eq.s32.totalorder %s21, 1
    %p86 = por %p84, %p85
    %p88 = scmp.ne.s32.totalorder %s73, %s87
    %p89 = scmp.eq.s32.totalorder %s21, 0
    %p90 = por %p88, %p89
    %s92 = sadd.s32 %s91, 1
    %p95 = scmp.eq.s32.totalorder %s15, 1
    %p96 = scmp.ne.s32.totalorder %s91, %s93
    %p97 = scmp.eq.s32.totalorder %s15, 0
    %p98 = por %p96, %p97
    %p99 = scmp.ne.s32.totalorder %s91, %s93
    %p100 = scmp.eq.s32.totalorder %s20, 1
    %p101 = por %p99, %p100
    %p102 = scmp.ne.s32.totalorder %s93, %s94
    %p103 = scmp.eq.s32.totalorder %s20, 0
    %p104 = por %p102, %p103
    %p105 = scmp.ne.s32.totalorder %s93, %s94
    %p106 = scmp.eq.s32.totalorder %s21, 1
    %p107 = por %p105, %p106
    %p109 = scmp.ne.s32.totalorder %s94, %s108
    %p110 = scmp.eq.s32.totalorder %s21, 0
    %p111 = por %p109, %p110
    %s113 = sadd.s32 %s112, 1
    %p116 = scmp.eq.s32.totalorder %s15, 1
    %p117 = scmp.ne.s32.totalorder %s112, %s114
    %p118 = scmp.eq.s32.totalorder %s15, 0
    %p119 = por %p117, %p118
    %p120 = scmp.ne.s32.totalorder %s112, %s114
    %p121 = scmp.eq.s32.totalorder %s20, 1
    %p122 = por %p120, %p121
    %p123 = scmp.ne.s32.totalorder %s114, %s115
    %p124 = scmp.eq.s32.totalorder %s20, 0
    %p125 = por %p123, %p124
    %p126 = scmp.ne.s32.totalorder %s114, %s115
    %p127 = scmp.eq.s32.totalorder %s21, 1
    %p128 = por %p126, %p127
    %p130 = scmp.ne.s32.totalorder %s115, %s129
    %p131 = scmp.eq.s32.totalorder %s21, 0
    %p132 = por %p130, %p131
    %s134 = sadd.s32 %s133, 1
    %p137 = scmp.eq.s32.totalorder %s15, 1
    %p138 = scmp.ne.s32.totalorder %s133, %s135
    %p139 = scmp.eq.s32.totalorder %s15, 0
    %p140 = por %p138, %p139
    %p141 = scmp.ne.s32.totalorder %s133, %s135
    %p142 = scmp.eq.s32.totalorder %s20, 1
    %p143 = por %p141, %p142
    %p144 = scmp.ne.s32.totalorder %s135, %s136
    %p145 = scmp.eq.s32.totalorder %s20, 0
    %p146 = por %p144, %p145
    %p147 = scmp.ne.s32.totalorder %s135, %s136
    %p148 = scmp.eq.s32.totalorder %s21, 1
    %p149 = por %p147, %p148
    %p151 = scmp.ne.s32.totalorder %s136, %s150
    %p152 = scmp.eq.s32.totalorder %s21, 0
    %p153 = por %p151, %p152
    %s155 = sadd.s32 %s154, 1
    %p158 = scmp.eq.s32.totalorder %s15, 1
    %p159 = scmp.ne.s32.totalorder %s154, %s156
    %p160 = scmp.eq.s32.totalorder %s15, 0
    %p161 = por %p159, %p160
    %p162 = scmp.ne.s32.totalorder %s154, %s156
    %p163 = scmp.eq.s32.totalorder %s20, 1
    %p164 = por %p162, %p163
    %p165 = scmp.ne.s32.totalorder %s156, %s157
    %p166 = scmp.eq.s32.totalorder %s20, 0
    %p167 = por %p165, %p166
    %p168 = scmp.ne.s32.totalorder %s156, %s157
    %p169 = scmp.eq.s32.totalorder %s21, 1
    %p170 = por %p168, %p169
    %p172 = scmp.ne.s32.totalorder %s157, %s171
    %p173 = scmp.eq.s32.totalorder %s21, 0
    %p174 = por %p172, %p173
    %s175 = ssub.s32 %s15, %s22
    %p176 = scmp.eq.s32.totalorder %s175, 0
    %s178 = sadd.s32 %s177, 1
    %s179 = scalar_select %p176, %s177, %s178
    %p182 = pneg %p176
    %p183 = scmp.eq.s32.totalorder %s15, 1
    %p184 = por %p182, %p183
    %p185 = scmp.ne.s32.totalorder %s177, %s180
    %p186 = scmp.eq.s32.totalorder %s15, 0
    %p187 = por %p185, %p186
    %p188 = scmp.ne.s32.totalorder %s177, %s180
    %p189 = scmp.eq.s32.totalorder %s20, 1
    %p190 = por %p188, %p189
    %p191 = scmp.ne.s32.totalorder %s180, %s181
    %p192 = scmp.eq.s32.totalorder %s20, 0
    %p193 = por %p191, %p192
    %p194 = scmp.ne.s32.totalorder %s180, %s181
    %p195 = scmp.eq.s32.totalorder %s21, 1
    %p196 = por %p194, %p195
    %p198 = scmp.ne.s32.totalorder %s181, %s197
    %p199 = scmp.eq.s32.totalorder %s21, 0
    %p200 = por %p198, %p199
    %p201 = scmp.le.s32.totalorder 1, %s15
    %p202 = scmp.lt.s32.totalorder %s15, 3
    %p203 = pnand %p201, %p202
    %p204 = pneg %p203
    // Predicated region
    $region9: #{mlp_forward.1} parent=5 // pred_check
      _
    $region10: #{mlp_forward.1} parent=5 // pred_check_branch
      %206 = sbr.rel (%p203) target = $region12
    $region11: #{mlp_forward.1} parent=5 // pred_region
      %s207 = ssub.s32 %s15, 1
      // Predicated region
      $region13: #{mlp_forward.1} parent=11 // pred_check
        %p208 = pneg %p62
      $region14: #{mlp_forward.1} parent=11 // pred_check_branch
        %210 = sbr.rel (%p208) target = $region16
      $region15: #{mlp_forward.1} parent=11 // pred_region
        _
      $region16: #{mlp_forward.1} parent=11 // pred_fallthru
        _
      // Predicated region
      $region17: #{mlp_forward.1} parent=11 // pred_check
        %p211 = pneg %p83
      $region18: #{mlp_forward.1} parent=11 // pred_check_branch
        %213 = sbr.rel (%p211) target = $region20
      $region19: #{mlp_forward.1} parent=11 // pred_region
        _
      $region20: #{mlp_forward.1} parent=11 // pred_fallthru
        _
      // Predicated region
      $region21: #{mlp_forward.1} parent=11 // pred_check
        %p214 = pneg %p104
      $region22: #{mlp_forward.1} parent=11 // pred_check_branch
        %216 = sbr.rel (%p214) target = $region24
      $region23: #{mlp_forward.1} parent=11 // pred_region
        _
      $region24: #{mlp_forward.1} parent=11 // pred_fallthru
        _
      // Predicated region
      $region25: #{mlp_forward.1} parent=11 // pred_check
        %p217 = pneg %p125
      $region26: #{mlp_forward.1} parent=11 // pred_check_branch
        %219 = sbr.rel (%p217) target = $region28
      $region27: #{mlp_forward.1} parent=11 // pred_region
        _
      $region28: #{mlp_forward.1} parent=11 // pred_fallthru
        _
      // Predicated region
      $region29: #{mlp_forward.1} parent=11 // pred_check
        %p220 = pneg %p146
      $region30: #{mlp_forward.1} parent=11 // pred_check_branch
        %222 = sbr.rel (%p220) target = $region32
      $region31: #{mlp_forward.1} parent=11 // pred_region
        _
      $region32: #{mlp_forward.1} parent=11 // pred_fallthru
        _
      // Predicated region
      $region33: #{mlp_forward.1} parent=11 // pred_check
        %p223 = pneg %p167
      $region34: #{mlp_forward.1} parent=11 // pred_check_branch
        %225 = sbr.rel (%p223) target = $region36
      $region35: #{mlp_forward.1} parent=11 // pred_region
        _
      $region36: #{mlp_forward.1} parent=11 // pred_fallthru
        _
    $region12: #{mlp_forward.1} parent=5 // pred_fallthru
      _
    %p226 = scmp.lt.s32.totalorder %s15, 2
    // Predicated region
    $region37: #{mlp_forward.1} parent=5 // pred_check
      %p227 = pneg %p226
    $region38: #{mlp_forward.1} parent=5 // pred_check_branch
      %229 = sbr.rel (%p227) target = $region40
    $region39: #{mlp_forward.1} parent=5 // pred_region
      // Predicated region
      $region41: #{mlp_forward.1} parent=39 // pred_check
        %p230 = pneg %p35
      $region42: #{mlp_forward.1} parent=39 // pred_check_branch
        %232 = sbr.rel (%p230) target = $region44
      $region43: #{mlp_forward.1} parent=39 // pred_region
        %s233 = smul.u32 16, %s15
        %p234 = scmp.lt.s32.totalorder %s233, 31
        %s235 = scalar_select %p234, %s233, 31
        %s236 = smul.addr %s235, 4
        %s237 = scalar_lea.vmem %s0, %s236
        %s238 = smul.u32 16, %s15
      $region44: #{mlp_forward.1} parent=39 // pred_fallthru
        _
    $region40: #{mlp_forward.1} parent=5 // pred_fallthru
      _
    %p239 = scmp.le.s32.totalorder 1, %s15
    %p240 = scmp.lt.s32.totalorder %s15, 3
    %p241 = pnand %p239, %p240
    %p242 = pneg %p241
    // Predicated region
    $region45: #{mlp_forward.1} parent=5 // pred_check
      _
    $region46: #{mlp_forward.1} parent=5 // pred_check_branch
      %244 = sbr.rel (%p241) target = $region48
    $region47: #{mlp_forward.1} parent=5 // pred_region
      %s245 = ssub.s32 %s15, 1
      %s246 = smul.u32 16, %s20
      %p247 = scmp.lt.s32.totalorder %s246, 31
      %s248 = scalar_select %p247, %s246, 31
      %s249 = smul.addr %s248, 4
      %s250 = scalar_lea.vmem %s0, %s249
      %p251 = pneg %p41
      %p252 = pneg %p38
      %p253 = pneg %p62
      %p254 = pneg %p59
      %p255 = pneg %p83
      %p256 = pneg %p80
      %p257 = pneg %p104
      %p258 = pneg %p101
      %p259 = pneg %p125
      %p260 = pneg %p122
      %p261 = pneg %p146
      %p262 = pneg %p143
      %p263 = pneg %p167
      %p264 = pneg %p164
      %p265 = pneg %p193
      %p266 = pneg %p190
      %p267 = scmp.lt.s32.totalorder %s20, 1
      %s268 = scalar_select %p267, %s20, 1
      %s269 = scalar_lea.vmem %s7, %s268
      %s270 = smul.u32 16, %s20
      %p271 = scmp.lt.s32.totalorder %s270, 31
      %s272 = scalar_select %p271, %s270, 31
      %s273 = smul.addr %s272, 4
      %s274 = scalar_lea.vmem %s0, %s273
      %s275 = smul.u32 16, %s20
      %p276 = scmp.lt.s32.totalorder %s20, 1
      %s277 = scalar_select %p276, %s20, 1
      %s278 = scalar_lea.vmem %s7, %s277
      %v280 = vld [vmem:[%s274] sm:$0xf]
      %v281 = vld [vmem:[%s274 + $0x4] sm:$0xf]
      %v282 = vld [vmem:[%s274 + $0x8] sm:$0xf]
      %v283 = vld [vmem:[%s274 + $0xc] sm:$0xf]
      %v284 = vld [vmem:[%s274 + $0x10] sm:$0xf]
      %v285 = vld [vmem:[%s274 + $0x14] sm:$0xf]
      %v286 = vld [vmem:[%s274 + $0x18] sm:$0xf]
      %v287 = vld [vmem:[%s274 + $0x1c] sm:$0xf]
      %v288 = vld [vmem:[%s274 + $0x20] sm:$0xf]
      %v289 = vld [vmem:[%s274 + $0x24] sm:$0xf]
      %v290 = vld [vmem:[%s274 + $0x28] sm:$0xf]
      %v291 = vld [vmem:[%s274 + $0x2c] sm:$0xf]
      %v292 = vld [vmem:[%s274 + $0x30] sm:$0xf]
      %v293 = vld [vmem:[%s274 + $0x34] sm:$0xf]
      %v294 = vld [vmem:[%s274 + $0x38] sm:$0xf]
      %v295 = vld [vmem:[%s274 + $0x3c] sm:$0xf]
      %v296 = vld [vmem:[%s1] sm:$0xf]
      %v297 = vld [vmem:[%s1 + $0x4] sm:$0xf]
      %v298 = vld [vmem:[%s1 + $0x8] sm:$0xf]
      %v299 = vld [vmem:[%s1 + $0xc] sm:$0xf]
      %v300 = vld [vmem:[%s1 + $0x10] sm:$0xf]
      %v301 = vld [vmem:[%s1 + $0x14] sm:$0xf]
      %v302 = vld [vmem:[%s1 + $0x18] sm:$0xf]
      %v303 = vld [vmem:[%s1 + $0x1c] sm:$0xf]
      %v304 = vld [vmem:[%s1 + $0x20] sm:$0xf]
      %v305 = vld [vmem:[%s1 + $0x24] sm:$0xf]
      %v306 = vld [vmem:[%s1 + $0x28] sm:$0xf]
      %v307 = vld [vmem:[%s1 + $0x2c] sm:$0xf]
      %v308 = vld [vmem:[%s2] sm:$0xff]
      %v309 = vld [vmem:[%s2 + $0x8] sm:$0xff]
      %v310 = vld [vmem:[%s2 + $0x10] sm:$0xff]
      %v311 = vld [vmem:[%s2 + $0x18] sm:$0xff]
      %v312 = vld [vmem:[%s2 + $0x20] sm:$0xff]
      %v313 = vld [vmem:[%s2 + $0x28] sm:$0xff]
      %v314 = vld [vmem:[%s2 + $0x30] sm:$0xff]
      %v315 = vld [vmem:[%s2 + $0x38] sm:$0xff]
      %v316 = vld [vmem:[%s2 + $0x40] sm:$0xff]
      %v317 = vld [vmem:[%s2 + $0x48] sm:$0xff]
      %v318 = vld [vmem:[%s2 + $0x50] sm:$0xff]
      %v319 = vld [vmem:[%s2 + $0x58] sm:$0xff]
      %321 = vset.pattern.permute.xlu0 0
      %322 = vperm.xlu0 %321, %v308
      %v323 = vpop.permute.xlu0 %322
      %326 = vset.pattern.permute.xlu0 0
      %327 = vperm.xlu0 %326, %v309
      %v328 = vpop.permute.xlu0 %327
      %331 = vset.pattern.permute.xlu0 0
      %332 = vperm.xlu0 %331, %v310
      %v333 = vpop.permute.xlu0 %332
      %336 = vset.pattern.permute.xlu0 0
      %337 = vperm.xlu0 %336, %v311
      %v338 = vpop.permute.xlu0 %337
      %341 = vset.pattern.permute.xlu0 0
      %342 = vperm.xlu0 %341, %v312
      %v343 = vpop.permute.xlu0 %342
      %346 = vset.pattern.permute.xlu0 0
      %347 = vperm.xlu0 %346, %v313
      %v348 = vpop.permute.xlu0 %347
      %351 = vset.pattern.permute.xlu0 0
      %352 = vperm.xlu0 %351, %v314
      %v353 = vpop.permute.xlu0 %352
      %356 = vset.pattern.permute.xlu0 0
      %357 = vperm.xlu0 %356, %v315
      %v358 = vpop.permute.xlu0 %357
      %361 = vset.pattern.permute.xlu0 0
      %362 = vperm.xlu0 %361, %v316
      %v363 = vpop.permute.xlu0 %362
      %366 = vset.pattern.permute.xlu0 0
      %367 = vperm.xlu0 %366, %v317
      %v368 = vpop.permute.xlu0 %367
      %371 = vset.pattern.permute.xlu0 0
      %372 = vperm.xlu0 %371, %v318
      %v373 = vpop.permute.xlu0 %372
      %376 = vset.pattern.permute.xlu0 0
      %377 = vperm.xlu0 %376, %v319
      %v378 = vpop.permute.xlu0 %377
      %v392 = vunpack.c.l.b16 %v296
      %v393 = vunpack.c.l.b16 %v297
      %v394 = vunpack.c.l.b16 %v298
      %v395 = vunpack.c.l.b16 %v299
      %v396 = vunpack.c.l.b16 %v300
      %v397 = vunpack.c.l.b16 %v301
      %v398 = vunpack.c.l.b16 %v302
      %v399 = vunpack.c.l.b16 %v303
      %v400 = vunpack.c.l.b16 %v304
      %v401 = vunpack.c.l.b16 %v305
      %v402 = vunpack.c.l.b16 %v306
      %v403 = vunpack.c.l.b16 %v307
      %v404 = vpack.c.b16 %v393, %v392
      %v405 = vpack.c.b16 %v395, %v394
      %v406 = vpack.c.b16 %v397, %v396
      %v407 = vpack.c.b16 %v399, %v398
      %v408 = vpack.c.b16 %v401, %v400
      %v409 = vpack.c.b16 %v403, %v402
      %v426 = vunpack.c.l.b16 %v280
      %v427 = vunpack.c.l.b16 %v281
      %v428 = vunpack.c.l.b16 %v282
      %v429 = vunpack.c.l.b16 %v283
      %v430 = vunpack.c.l.b16 %v284
      %v431 = vunpack.c.l.b16 %v285
      %v432 = vunpack.c.l.b16 %v286
      %v433 = vunpack.c.l.b16 %v287
      %v434 = vunpack.c.l.b16 %v288
      %v435 = vunpack.c.l.b16 %v289
      %v436 = vunpack.c.l.b16 %v290
      %v437 = vunpack.c.l.b16 %v291
      %v438 = vunpack.c.l.b16 %v292
      %v439 = vunpack.c.l.b16 %v293
      %v440 = vunpack.c.l.b16 %v294
      %v441 = vunpack.c.l.b16 %v295
      %v442 = vpack.c.b16 %v427, %v426
      %v443 = vpack.c.b16 %v429, %v428
      %v444 = vpack.c.b16 %v431, %v430
      %v445 = vpack.c.b16 %v433, %v432
      %v446 = vpack.c.b16 %v435, %v434
      %v447 = vpack.c.b16 %v437, %v436
      %v448 = vpack.c.b16 %v439, %v438
      %v449 = vpack.c.b16 %v441, %v440
      %vm450 = vcmask 89088
      %v452 = vsel %vm450, %v404, 0
      %v455 = vsel %vm450, %v405, 0
      %v458 = vsel %vm450, %v406, 0
      %v461 = vsel %vm450, %v407, 0
      %v464 = vsel %vm450, %v408, 0
      %v467 = vsel %vm450, %v409, 0
      %v470 = vsel %vm450, %v442, 0
      %v473 = vsel %vm450, %v443, 0
      %v476 = vsel %vm450, %v444, 0
      %v479 = vsel %vm450, %v445, 0
      %v482 = vsel %vm450, %v446, 0
      %v485 = vsel %vm450, %v447, 0
      %v488 = vsel %vm450, %v448, 0
      %v491 = vsel %vm450, %v449, 0
      %493 = vmatprep.subr.bf16.mxu0 0
      %494 = vmatpush1.bf16.xpose.msra.mxu0 %v470
      %495 = vmatprep.subr.bf16.mxu0 0
      %496 = vmatpush1.bf16.xpose.msra.mxu0 %v473
      %497 = vmatprep.subr.bf16.mxu0 0
      %498 = vmatpush1.bf16.xpose.msra.mxu0 %v476
      %499 = vmatprep.subr.bf16.mxu0 0
      %500 = vmatpush1.bf16.xpose.msra.mxu0 %v479
      %501 = vmatprep.subr.bf16.mxu0 0
      %502 = vmatpush1.bf16.xpose.msra.mxu0 %v482
      %503 = vmatprep.subr.bf16.mxu0 0
      %504 = vmatpush1.bf16.xpose.msra.mxu0 %v485
      %505 = vmatprep.subr.bf16.mxu0 0
      %506 = vmatpush1.bf16.xpose.msra.mxu0 %v488
      %507 = vmatprep.subr.bf16.mxu0 0
      %508 = vmatpush1.bf16.xpose.msra.mxu0 %v491
      %509 = vmatprep.subr.bf16.mxu0 0
      %510 = vmatpush1.bf16.xpose.msra.mxu0 0
      %511 = vmatprep.subr.bf16.mxu0 0
      %512 = vmatpush1.bf16.xpose.msra.mxu0 0
      %513 = vmatprep.subr.bf16.mxu0 0
      %514 = vmatpush1.bf16.xpose.msra.mxu0 0
      %515 = vmatprep.subr.bf16.mxu0 0
      %516 = vmatpush1.bf16.xpose.msra.mxu0 0
      %517 = vmatprep.subr.bf16.mxu0 0
      %518 = vmatpush1.bf16.xpose.msra.mxu0 0
      %519 = vmatprep.subr.bf16.mxu0 0
      %520 = vmatpush1.bf16.xpose.msra.mxu0 0
      %521 = vmatprep.subr.bf16.mxu0 0
      %522 = vmatpush1.bf16.xpose.msra.mxu0 0
      %523 = vmatprep.subr.bf16.mxu0 0
      %524 = vmatpush1.bf16.xpose.msra.mxu0 0
      %525 = vmatprep.mubr.bf16.mxu0 0
      %526 = vmatmul.mubr.bf16.gmra.mrb[0].mxu0 %v452
      %v527 = vpop.f32.mrb[0].mxu0
      %v528 = vadd.f32 %v323, %v527
      %v529 = vpop.f32.mrb[0].mxu0
      %v530 = vpop.f32.mrb[0].mxu0
      %v531 = vadd.f32 %v328, %v530
      %v532 = vpop.f32.mrb[0].mxu0
      %533 = vmatprep.mubr.bf16.mxu0 0
      %534 = vmatmul.mubr.bf16.gmra.mrb[0].mxu0 %v455
      %v535 = vpop.f32.mrb[0].mxu0
      %v536 = vadd.f32 %v333, %v535
      %v537 = vpop.f32.mrb[0].mxu0
      %v538 = vpop.f32.mrb[0].mxu0
      %v539 = vadd.f32 %v338, %v538
      %v540 = vpop.f32.mrb[0].mxu0
      %541 = vmatprep.mubr.bf16.mxu0 0
      %542 = vmatmul.mubr.bf16.gmra.mrb[0].mxu0 %v458
      %v543 = vpop.f32.mrb[0].mxu0
      %v544 = vadd.f32 %v343, %v543
      %v545 = vpop.f32.mrb[0].mxu0
      %v546 = vpop.f32.mrb[0].mxu0
      %v547 = vadd.f32 %v348, %v546
      %v548 = vpop.f32.mrb[0].mxu0
      %549 = vmatprep.mubr.bf16.mxu0 0
      %550 = vmatmul.mubr.bf16.gmra.mrb[0].mxu0 %v461
      %v551 = vpop.f32.mrb[0].mxu0
      %v552 = vadd.f32 %v353, %v551
      %v553 = vpop.f32.mrb[0].mxu0
      %v554 = vpop.f32.mrb[0].mxu0
      %v555 = vadd.f32 %v358, %v554
      %v556 = vpop.f32.mrb[0].mxu0
      %557 = vmatprep.mubr.bf16.mxu0 0
      %558 = vmatmul.mubr.bf16.gmra.mrb[0].mxu0 %v464
      %v559 = vpop.f32.mrb[0].mxu0
      %v560 = vadd.f32 %v363, %v559
      %v561 = vpop.f32.mrb[0].mxu0
      %v562 = vpop.f32.mrb[0].mxu0
      %v563 = vadd.f32 %v368, %v562
      %v564 = vpop.f32.mrb[0].mxu0
      %565 = vmatprep.mubr.bf16.mxu0 0
      %566 = vmatmul.mubr.bf16.gmra.mrb[0].mxu0 %v467
      %v567 = vpop.f32.mrb[0].mxu0
      %v568 = vadd.f32 %v373, %v567
      %v569 = vpop.f32.mrb[0].mxu0
      %v570 = vpop.f32.mrb[0].mxu0
      %v571 = vadd.f32 %v378, %v570
      %v572 = vpop.f32.mrb[0].mxu0
      %573 = vdwg.mxu0
      %v574 = vmax.f32 %v528, 0.0
      %v575 = vmax.f32 %v531, 0.0
      %v576 = vmax.f32 %v536, 0.0
      %v577 = vmax.f32 %v539, 0.0
      %v578 = vmax.f32 %v544, 0.0
      %v579 = vmax.f32 %v547, 0.0
      %v580 = vmax.f32 %v552, 0.0
      %v581 = vmax.f32 %v555, 0.0
      %v582 = vmax.f32 %v560, 0.0
      %v583 = vmax.f32 %v563, 0.0
      %v584 = vmax.f32 %v568, 0.0
      %v585 = vmax.f32 %v571, 0.0
      %v586 = vpack.c.bf16 %v575, %v574
      %v587 = vpack.c.bf16 %v577, %v576
      %v588 = vpack.c.bf16 %v579, %v578
      %v589 = vpack.c.bf16 %v581, %v580
      %v590 = vpack.c.bf16 %v583, %v582
      %v591 = vpack.c.bf16 %v585, %v584
      %v592 = vld [vmem:[%s3] sm:$0xf]
      %v593 = vld [vmem:[%s3 + $0x4] sm:$0xf]
      %v594 = vld [vmem:[%s3 + $0x8] sm:$0xf]
      %v595 = vld [vmem:[%s3 + $0xc] sm:$0xf]
      %v596 = vld [vmem:[%s3 + $0x10] sm:$0xf]
      %v597 = vld [vmem:[%s3 + $0x14] sm:$0xf]
      %v598 = vld [vmem:[%s3 + $0x18] sm:$0xf]
      %v599 = vld [vmem:[%s3 + $0x1c] sm:$0xf]
      %v600 = vld [vmem:[%s4] sm:$0xff]
      %v601 = vld [vmem:[%s4 + $0x8] sm:$0xff]
      %v602 = vld [vmem:[%s4 + $0x10] sm:$0xff]
      %v603 = vld [vmem:[%s4 + $0x18] sm:$0xff]
      %v604 = vld [vmem:[%s4 + $0x20] sm:$0xff]
      %v605 = vld [vmem:[%s4 + $0x28] sm:$0xff]
      %v606 = vld [vmem:[%s4 + $0x30] sm:$0xff]
      %v607 = vld [vmem:[%s4 + $0x38] sm:$0xff]
      %609 = vset.pattern.permute.xlu0 0
      %610 = vperm.xlu0 %609, %v600
      %v611 = vpop.permute.xlu0 %610
      %614 = vset.pattern.permute.xlu0 0
      %615 = vperm.xlu0 %614, %v601
      %v616 = vpop.permute.xlu0 %615
      %619 = vset.pattern.permute.xlu0 0
      %620 = vperm.xlu0 %619, %v602
      %v621 = vpop.permute.xlu0 %620
      %624 = vset.pattern.permute.xlu0 0
      %625 = vperm.xlu0 %624, %v603
      %v626 = vpop.permute.xlu0 %625
      %629 = vset.pattern.permute.xlu0 0
      %630 = vperm.xlu0 %629, %v604
      %v631 = vpop.permute.xlu0 %630
      %634 = vset.pattern.permute.xlu0 0
      %635 = vperm.xlu0 %634, %v605
      %v636 = vpop.permute.xlu0 %635
      %639 = vset.pattern.permute.xlu0 0
      %640 = vperm.xlu0 %639, %v606
      %v641 = vpop.permute.xlu0 %640
      %644 = vset.pattern.permute.xlu0 0
      %645 = vperm.xlu0 %644, %v607
      %v646 = vpop.permute.xlu0 %645
      %v656 = vunpack.c.l.b16 %v592
      %v657 = vunpack.c.l.b16 %v593
      %v658 = vunpack.c.l.b16 %v594
      %v659 = vunpack.c.l.b16 %v595
      %v660 = vunpack.c.l.b16 %v596
      %v661 = vunpack.c.l.b16 %v597
      %v662 = vunpack.c.l.b16 %v598
      %v663 = vunpack.c.l.b16 %v599
      %v664 = vpack.c.b16 %v657, %v656
      %v665 = vpack.c.b16 %v659, %v658
      %v666 = vpack.c.b16 %v661, %v660
      %v667 = vpack.c.b16 %v663, %v662
      %vm668 = vcmask 785408
      %v670 = vsel %vm668, %v664, 0
      %v673 = vsel %vm668, %v665, 0
      %v676 = vsel %vm668, %v666, 0
      %v679 = vsel %vm668, %v667, 0
      %681 = vmatprep.subr.bf16.mxu0 0
      %682 = vmatpush1.bf16.msra.mxu0 %v586
      %683 = vmatprep.subr.bf16.mxu0 0
      %684 = vmatpush1.bf16.msra.mxu0 %v587
      %685 = vmatprep.subr.bf16.mxu0 0
      %686 = vmatpush1.bf16.msra.mxu0 %v588
      %687 = vmatprep.subr.bf16.mxu0 0
      %688 = vmatpush1.bf16.msra.mxu0 %v589
      %689 = vmatprep.subr.bf16.mxu0 0
      %690 = vmatpush1.bf16.msra.mxu0 %v590
      %691 = vmatprep.subr.bf16.mxu0 0
      %692 = vmatpush1.bf16.msra.mxu0 %v591
      %693 = vmatprep.subr.bf16.mxu0 0
      %694 = vmatpush1.bf16.msra.mxu0 0
      %695 = vmatprep.subr.bf16.mxu0 0
      %696 = vmatpush1.bf16.msra.mxu0 0
      %697 = vmatprep.subr.bf16.mxu0 0
      %698 = vmatpush1.bf16.msra.mxu0 0
      %699 = vmatprep.subr.bf16.mxu0 0
      %700 = vmatpush1.bf16.msra.mxu0 0
      %701 = vmatprep.subr.bf16.mxu0 0
      %702 = vmatpush1.bf16.msra.mxu0 0
      %703 = vmatprep.subr.bf16.mxu0 0
      %704 = vmatpush1.bf16.msra.mxu0 0
      %705 = vmatprep.subr.bf16.mxu0 0
      %706 = vmatpush1.bf16.msra.mxu0 0
      %707 = vmatprep.subr.bf16.mxu0 0
      %708 = vmatpush1.bf16.msra.mxu0 0
      %709 = vmatprep.subr.bf16.mxu0 0
      %710 = vmatpush1.bf16.msra.mxu0 0
      %711 = vmatprep.subr.bf16.mxu0 0
      %712 = vmatpush1.bf16.msra.mxu0 0
      %713 = vmatprep.mubr.bf16.mxu0 0
      %714 = vmatmul.mubr.bf16.gmra.mrb[0].mxu0 %v670
      %v715 = vpop.f32.mrb[0].mxu0
      %v716 = vadd.f32 %v611, %v715
      %v717 = vpop.f32.mrb[0].mxu0
      %v718 = vpop.f32.mrb[0].mxu0
      %v719 = vadd.f32 %v616, %v718
      %v720 = vpop.f32.mrb[0].mxu0
      %721 = vmatprep.mubr.bf16.mxu0 0
      %722 = vmatmul.mubr.bf16.gmra.mrb[0].mxu0 %v673
      %v723 = vpop.f32.mrb[0].mxu0
      %v724 = vadd.f32 %v621, %v723
      %v725 = vpop.f32.mrb[0].mxu0
      %v726 = vpop.f32.mrb[0].mxu0
      %v727 = vadd.f32 %v626, %v726
      %v728 = vpop.f32.mrb[0].mxu0
      %729 = vmatprep.mubr.bf16.mxu0 0
      %730 = vmatmul.mubr.bf16.gmra.mrb[0].mxu0 %v676
      %v731 = vpop.f32.mrb[0].mxu0
      %v732 = vadd.f32 %v631, %v731
      %v733 = vpop.f32.mrb[0].mxu0
      %v734 = vpop.f32.mrb[0].mxu0
      %v735 = vadd.f32 %v636, %v734
      %v736 = vpop.f32.mrb[0].mxu0
      %737 = vmatprep.mubr.bf16.mxu0 0
      %738 = vmatmul.mubr.bf16.gmra.mrb[0].mxu0 %v679
      %v739 = vpop.f32.mrb[0].mxu0
      %v740 = vadd.f32 %v641, %v739
      %v741 = vpop.f32.mrb[0].mxu0
      %v742 = vpop.f32.mrb[0].mxu0
      %v743 = vadd.f32 %v646, %v742
      %v744 = vpop.f32.mrb[0].mxu0
      %745 = vdwg.mxu0
      %v746 = vmax.f32 %v716, 0.0
      %v747 = vmax.f32 %v719, 0.0
      %v748 = vmax.f32 %v724, 0.0
      %v749 = vmax.f32 %v727, 0.0
      %v750 = vmax.f32 %v732, 0.0
      %v751 = vmax.f32 %v735, 0.0
      %v752 = vmax.f32 %v740, 0.0
      %v753 = vmax.f32 %v743, 0.0
      %v754 = vld [vmem:[%s5] sm:$0xff]
      %v755 = vld [vmem:[%s5 + $0x8] sm:$0xff]
      %v756 = vld [vmem:[%s5 + $0x10] sm:$0xff]
      %v757 = vld [vmem:[%s5 + $0x18] sm:$0xff]
      %v758 = vld [vmem:[%s5 + $0x20] sm:$0xff]
      %v759 = vld [vmem:[%s5 + $0x28] sm:$0xff]
      %v760 = vld [vmem:[%s5 + $0x30] sm:$0xff]
      %v761 = vld [vmem:[%s5 + $0x38] sm:$0xff]
      %763 = vset.pattern.permute.xlu0 0
      %764 = vperm.xlu0 %763, %v754
      %v765 = vpop.permute.xlu0 %764
      %768 = vset.pattern.permute.xlu0 0
      %769 = vperm.xlu0 %768, %v755
      %v770 = vpop.permute.xlu0 %769
      %773 = vset.pattern.permute.xlu0 0
      %774 = vperm.xlu0 %773, %v756
      %v775 = vpop.permute.xlu0 %774
      %778 = vset.pattern.permute.xlu0 0
      %779 = vperm.xlu0 %778, %v757
      %v780 = vpop.permute.xlu0 %779
      %783 = vset.pattern.permute.xlu0 0
      %784 = vperm.xlu0 %783, %v758
      %v785 = vpop.permute.xlu0 %784
      %788 = vset.pattern.permute.xlu0 0
      %789 = vperm.xlu0 %788, %v759
      %v790 = vpop.permute.xlu0 %789
      %793 = vset.pattern.permute.xlu0 0
      %794 = vperm.xlu0 %793, %v760
      %v795 = vpop.permute.xlu0 %794
      %798 = vset.pattern.permute.xlu0 0
      %799 = vperm.xlu0 %798, %v761
      %v800 = vpop.permute.xlu0 %799
      %v802 = vmul.f32 %v746, %v765
      %v803 = vmul.f32 %v747, %v770
      %v804 = vmul.f32 %v748, %v775
      %v805 = vmul.f32 %v749, %v780
      %v806 = vmul.f32 %v750, %v785
      %v807 = vmul.f32 %v751, %v790
      %v808 = vmul.f32 %v752, %v795
      %v809 = vmul.f32 %v753, %v800
      %v810 = vadd.f32 %v802, %v803
      %v811 = vadd.f32 %v810, %v804
      %v812 = vadd.f32 %v811, %v805
      %v813 = vadd.f32 %v812, %v806
      %v814 = vadd.f32 %v813, %v807
      %v815 = vadd.f32 %v814, %v808
      %v816 = vadd.f32 %v815, %v809
      %v817 = vrot.slane %v816, 4
      %v818 = vadd.f32 %v816, %v817
      %v819 = vrot.slane %v818, 2
      %v820 = vadd.f32 %v818, %v819
      %v821 = vrot.slane %v820, 1
      %v822 = vadd.f32 %v820, %v821
      %v823 = vld [vmem:[#allocation2] sm:$0x1]
      %825 = vset.pattern.permute.xlu0 0
      %826 = vperm.xlu0 %825, %v823
      %v827 = vpop.permute.xlu0 %826
      %v829 = vlaneseq
      %v830 = vshrl.u32 %v829, 7
      %v831 = vsub.s32 0, %v830
      %v832 = vrot.slane %v827, %v831
      %v833 = vadd.f32 %v822, %v832
      %834 = vst [vmem:[%s278] sm:$0x1] %v833
      %p835 = scmp.lt.s32.totalorder %s20, 1
      %s836 = scalar_select %p835, %s20, 1
      %s837 = scalar_lea.vmem %s7, %s836
      // Predicated region
      $region49: #{mlp_forward.1} parent=47 // pred_check
        %p838 = pneg %p190
      $region50: #{mlp_forward.1} parent=47 // pred_check_branch
        %840 = sbr.rel (%p838) target = $region52
      $region51: #{mlp_forward.1} parent=47 // pred_region
        _
      $region52: #{mlp_forward.1} parent=47 // pred_fallthru
        _
    $region48: #{mlp_forward.1} parent=5 // pred_fallthru
      _
    %p841 = scmp.le.s32.totalorder 2, %s15
    // Predicated region
    $region53: #{mlp_forward.1} parent=5 // pred_check
      %p842 = pneg %p841
    $region54: #{mlp_forward.1} parent=5 // pred_check_branch
      %844 = sbr.rel (%p842) target = $region56
    $region55: #{mlp_forward.1} parent=5 // pred_region
      %s845 = ssub.s32 %s15, 2
      // Predicated region
      $region57: #{mlp_forward.1} parent=55 // pred_check
        %p846 = pneg %p196
      $region58: #{mlp_forward.1} parent=55 // pred_check_branch
        %848 = sbr.rel (%p846) target = $region60
      $region59: #{mlp_forward.1} parent=55 // pred_region
        %p849 = scmp.lt.s32.totalorder %s21, 1
        %s850 = scalar_select %p849, %s21, 1
        %s851 = scalar_lea.vmem %s7, %s850
      $region60: #{mlp_forward.1} parent=55 // pred_fallthru
        _
    $region56: #{mlp_forward.1} parent=5 // pred_fallthru
      _
  $region6: #{mlp_forward.1} parent=0 // loop_footer
    %s19 = sadd.s32 1, %s15
  $region7: #{mlp_forward.1} parent=0 // loop_footer_branch
    %14 = sbr.rel target = $region3
  $region8: #{mlp_forward.1} parent=0 // loop_exit
    _

</llo_original>
